<compile_context>
chip_gen: v7x
topology: tpu7x:2x2x1
jax: 0.10.0
libtpu: 0.0.40
codegen_flags: <defaults>
</compile_context>

<pallas_src>
import jax
import jax.numpy as jnp
from jax.experimental import pallas as pl
from jax.experimental.pallas import tpu as pltpu


def _gcn_kernel(h_ref, wft_ref, adjt_ref, out_ref):
    # equation (1): z = W h  for all source nodes.  bf16 MXU, f32 accumulation.
    z = jnp.dot(h_ref[...], wft_ref[...], preferred_element_type=jnp.float32)

    adj_t = adjt_ref[...]                                # (TM, N) bf16, [dst, src]

    # message + reduce(sum): sum_{u->v} z_u  as one MXU matmul in [dst, src].
    agg = jnp.dot(adj_t, z.astype(adj_t.dtype),
                  preferred_element_type=jnp.float32)    # (TM, F_pad) f32

    # reduce(mean): divide by in-degree.  Degrees are exact small integers, so
    # the bf16 adjacency and f32 lane-reduce are exact.
    deg = jnp.sum(adj_t.astype(jnp.float32), axis=-1, keepdims=True)
    # TODO(synk): DGL leaves zero-in-degree nodes at 0 (reduce never fires);
    # max(deg, 1) reproduces that, but the example graph has self-loops so the
    # path is untested.
    inv = pl.reciprocal(jnp.maximum(deg, jnp.float32(1.0)), approx=True)

    out_ref[...] = (agg * inv).astype(out_ref.dtype)


def gcn_layer_forward(h, w_fc, adj, *, block_rows=64):
    """Dense-graph GCN (mean-aggregation) forward.

    h     : (N, F_in)      node features
    w_fc  : (F_out, F_in)  nn.Linear(in, out, bias=False).weight
    adj   : (N, N)         adj[src, dst] = 1 if edge src->dst exists
    returns (N, F_out)     per-destination-node output h'
    """
    N, f_in = h.shape
    f_out = w_fc.shape[0]

    # Lane-dense output: pad F_out up to a multiple of 128 with zero columns in
    # W (zero columns propagate to zero output columns; sliced off below).
    f_pad = max(128, ((f_out + 127) // 128) * 128)
    wft = jnp.zeros((f_in, f_pad), jnp.float32).at[:, :f_out].set(
        jnp.asarray(w_fc, jnp.float32).T)

    # bf16 operands at the boundary; 0/1 adjacency is exact in bf16.
    h_b = jnp.asarray(h).astype(jnp.bfloat16)
    wft_b = wft.astype(jnp.bfloat16)
    adjt_b = jnp.asarray(adj).T.astype(jnp.bfloat16)      # [dst, src]

    # Tile destination rows; each grid step handles one block of dst nodes so
    # the two v7x TensorCores can split the grid ("parallel").
    tm = block_rows if (block_rows <= N and N % block_rows == 0) else N
    grid = (N // tm,)

    out = pl.pallas_call(
        _gcn_kernel,
        out_shape=jax.ShapeDtypeStruct((N, f_pad), jnp.float32),
        grid_spec=pltpu.PrefetchScalarGridSpec(
            num_scalar_prefetch=0,
            grid=grid,
            in_specs=[
                pl.BlockSpec((N, f_in), lambda i: (0, 0)),     # h (all srcs)
                pl.BlockSpec((f_in, f_pad), lambda i: (0, 0)), # W.T padded
                pl.BlockSpec((tm, N), lambda i: (i, 0)),       # adj.T dst block
            ],
            out_specs=pl.BlockSpec((tm, f_pad), lambda i: (i, 0)),
        ),
        compiler_params=pltpu.CompilerParams(
            dimension_semantics=("parallel",)),
    )(h_b, wft_b, adjt_b)

    return out[:, :f_out]


def gcn_reference(h, w_fc, adj):
    """Pure-JAX reference mirroring the PyTorch/DGL forward (dense graph)."""
    hp = jax.lax.Precision.HIGHEST
    z = jnp.dot(h, w_fc.T, precision=hp)                  # (N, F_out)
    deg = jnp.sum(adj, axis=0)                            # in-degree per dst
    agg = jnp.dot(adj.T, z, precision=hp)                 # sum over incoming srcs
    return agg / jnp.maximum(deg, 1.0)[:, None]           # mean


if __name__ == "__main__":
    N, F_IN, F_OUT = 128, 16, 32

    key = jax.random.PRNGKey(0)
    k1, k2, k3 = jax.random.split(key, 3)

    h = jax.random.normal(k1, (N, F_IN), dtype=jnp.float32)
    w_fc = 0.1 * jax.random.normal(k2, (F_OUT, F_IN), dtype=jnp.float32)
    # random sparse-ish graph; self-loops guarantee in-degree >= 1 per node
    adj = (jax.random.uniform(k3, (N, N)) < 0.3).astype(jnp.float32)
    adj = jnp.maximum(adj, jnp.eye(N, dtype=jnp.float32))

    out = jax.block_until_ready(gcn_layer_forward(h, w_fc, adj))
    ref = jax.block_until_ready(gcn_reference(h, w_fc, adj))

    assert out.shape == (N, F_OUT)
    assert bool(jnp.all(jnp.isfinite(out)))
    assert bool(jnp.allclose(out, ref, atol=2e-2, rtol=2e-2)), (
        float(jnp.max(jnp.abs(out - ref))))

    print("KERNEL_OK")
</pallas_src>

<mosaic_0001>
module attributes {stable_mosaic.version = 11 : i64} {
  func.func @_gcn_kernel(%arg0: i32, %arg1: memref<128x16xbf16, #tpu.memory_space<vmem>>, %arg2: memref<16x128xbf16, #tpu.memory_space<vmem>>, %arg3: memref<64x128xbf16, #tpu.memory_space<vmem>>, %arg4: memref<64x128xf32, #tpu.memory_space<vmem>>) attributes {dimension_semantics = [#tpu.dimension_semantics<parallel>], iteration_bounds = array<i64: 2>, scalar_prefetch = 0 : i64, scratch_operands = 0 : i64, tpu.core_type = #tpu.core_type<tc>, window_params = [{pipeline_mode = #tpu.pipeline_mode<synchronous>, transform_indices = @transform_0, window_bounds = array<i64: 128, 16>}, {pipeline_mode = #tpu.pipeline_mode<synchronous>, transform_indices = @transform_1, window_bounds = array<i64: 16, 128>}, {transform_indices = @transform_2, window_bounds = array<i64: 64, 128>}, {transform_indices = @transform_3, window_bounds = array<i64: 64, 128>}]} {
    %c0 = arith.constant 0 : index
    %c0_0 = arith.constant 0 : index
    %0 = vector.load %arg1[%c0, %c0_0] : memref<128x16xbf16, #tpu.memory_space<vmem>>, vector<128x16xbf16>
    %c0_1 = arith.constant 0 : index
    %c0_2 = arith.constant 0 : index
    %1 = vector.load %arg2[%c0_1, %c0_2] : memref<16x128xbf16, #tpu.memory_space<vmem>>, vector<16x128xbf16>
    %cst = arith.constant dense<0.000000e+00> : vector<128x128xf32>
    %2 = tpu.matmul %0, %1, %cst {dimension_numbers = #tpu.dot_dimension_numbers<[1], [0], [0], [1], [0, 0, 1, 1], [], []>} : vector<128x16xbf16>, vector<16x128xbf16>, vector<128x128xf32> -> vector<128x128xf32>
    %c0_3 = arith.constant 0 : index
    %c0_4 = arith.constant 0 : index
    %3 = vector.load %arg3[%c0_3, %c0_4] : memref<64x128xbf16, #tpu.memory_space<vmem>>, vector<64x128xbf16>
    %4 = arith.truncf %2 : vector<128x128xf32> to vector<128x128xbf16>
    %cst_5 = arith.constant dense<0.000000e+00> : vector<64x128xf32>
    %5 = tpu.matmul %3, %4, %cst_5 {dimension_numbers = #tpu.dot_dimension_numbers<[1], [0], [0], [1], [0, 0, 1, 1], [], []>} : vector<64x128xbf16>, vector<128x128xbf16>, vector<64x128xf32> -> vector<64x128xf32>
    %6 = arith.extf %3 : vector<64x128xbf16> to vector<64x128xf32>
    %cst_6 = arith.constant dense<0.000000e+00> : vector<64xf32>
    %7 = vector.multi_reduction <add>, %6, %cst_6 [1] : vector<64x128xf32> to vector<64xf32>
    %8 = vector.shape_cast %7 : vector<64xf32> to vector<64x1xf32>
    %cst_7 = arith.constant 1.000000e+00 : f32
    %9 = vector.broadcast %cst_7 : f32 to vector<64x1xf32>
    %10 = arith.maximumf %8, %9 : vector<64x1xf32>
    %11 = tpu.reciprocal %10 {approx = true} : vector<64x1xf32> -> vector<64x1xf32>
    %12 = vector.broadcast %11 : vector<64x1xf32> to vector<64x128xf32>
    %13 = arith.mulf %5, %12 : vector<64x128xf32>
    %c0_8 = arith.constant 0 : index
    %c0_9 = arith.constant 0 : index
    %14 = vector.load %arg4[%c0_8, %c0_9] : memref<64x128xf32, #tpu.memory_space<vmem>>, vector<64x128xf32>
    tpu.vector_store %arg4[%c0_8, %c0_9], %13 {strides = array<i32>} : memref<64x128xf32, #tpu.memory_space<vmem>>, vector<64x128xf32>,
    return
  }
  func.func @transform_0(%arg0: i32) -> (i32, i32) {
    %c0_i32 = arith.constant 0 : i32
    %c0_i32_0 = arith.constant 0 : i32
    %c0_i32_1 = arith.constant 0 : i32
    return %c0_i32, %c0_i32_0 : i32, i32
  }
  func.func @transform_1(%arg0: i32) -> (i32, i32) {
    %c0_i32 = arith.constant 0 : i32
    %c0_i32_0 = arith.constant 0 : i32
    %c0_i32_1 = arith.constant 0 : i32
    return %c0_i32, %c0_i32_0 : i32, i32
  }
  func.func @transform_2(%arg0: i32) -> (i32, i32) {
    %c0_i32 = arith.constant 0 : i32
    %c0_i32_0 = arith.constant 0 : i32
    return %arg0, %c0_i32 : i32, i32
  }
  func.func @transform_3(%arg0: i32) -> (i32, i32) {
    %c0_i32 = arith.constant 0 : i32
    %c0_i32_0 = arith.constant 0 : i32
    return %arg0, %c0_i32 : i32, i32
  }
}

</mosaic_0001>

<llo_original>
// kernel: tpu_custom_call.1
$region0: #{tpu_custom_call.1}
  #allocation0 [shape = 'u32[]', space=smem, size = 0x4, offset = 0x4, fixed_abs, tag = 'smem constant byte address 0x4 - core index']
  #allocation1 [shape = 'u32[144,128]{1,0:T(1,128)}', space=vmem, size = 0x12000, scoped, tag = 'internal scratch']
  %s0 = inlined_call_operand.vmem [shape: bf16[128,16], index: 0, kind: input, shape index: {}]
  %s1 = inlined_call_operand.vmem [shape: bf16[16,128], index: 1, kind: input, shape index: {}]
  %s2 = inlined_call_operand.vmem [shape: bf16[128,128], index: 2, kind: input, shape index: {}]
  %s3 = inlined_call_operand.hbm [shape: f32[128,128], index: 3, kind: output, shape index: {}]
  %s4 = sld [smem:[#allocation0]]
  $region45: #{tpu_custom_call.1} parent=0
    _
  %s6 = ssub.s32 1, %s4
  %s7 = scalar_select 0, %s6, %s4
  $region1: #{tpu_custom_call.1} parent=0
    #allocation2 [shape = 'u8[65536]{0}', space=vmem, size = 0x10000, scoped, tag = 'output window, operand 0']
    #allocation3 [shape = 's32[2]{0}', space=sflag, size = 0x8, scoped, tag = 'scoped memory for tpu_custom_call.1']
    %8 = vsyncpa [#allocation3], 0
    %s9 = scalar_lea.sflag [#allocation3], 1
    %10 = vsyncpa %s9, 0
    loop: start=0, step=1, limit=4
    $region2: #{tpu_custom_call.1} parent=1 // loop_pre_header
      _
    $region3: #{tpu_custom_call.1} parent=1 // loop_header
      %s12 = sphi 0, %s16
      %p13 = scmp.ge.s32.totalorder %s12, 4
      %s20 = sphi 0, %s20
      %s22 = sphi 0, %s20
      %s23 = sphi 0, %s22
      %s37 = sphi 0, %s23
      %s41 = sphi 0, %s41
      %s43 = sphi 0, %s41
      %s44 = sphi 0, %s43
      %s58 = sphi 0, %s44
      %s64 = sphi 0, %s66
      %s67 = sphi 0, %s64
      %s68 = sphi 0, %s67
      %s84 = sphi 0, %s68
      %s90 = sphi 0, %s92
      %s93 = sphi 0, %s90
      %s94 = sphi 0, %s93
      %s110 = sphi 0, %s94
    $region4: #{tpu_custom_call.1} parent=1 // loop_header_branch
      %15 = sbr.rel (%p13) target = $region8
    $region5: #{tpu_custom_call.1} parent=1 // loop_body
      %s17 = ssub.s32 %s12, 1
      %s18 = ssub.s32 %s12, 2
      %s19 = sadd.s32 %s12, 1
      %s21 = sadd.s32 %s20, 1
      %p24 = scmp.eq.s32.totalorder %s12, 1
      %p25 = scmp.ne.s32.totalorder %s20, %s22
      %p26 = scmp.eq.s32.totalorder %s12, 0
      %p27 = por %p25, %p26
      %p28 = scmp.ne.s32.totalorder %s20, %s22
      %p29 = scmp.eq.s32.totalorder %s17, 1
      %p30 = por %p28, %p29
      %p31 = scmp.ne.s32.totalorder %s22, %s23
      %p32 = scmp.eq.s32.totalorder %s17, 0
      %p33 = por %p31, %p32
      %p34 = scmp.ne.s32.totalorder %s22, %s23
      %p35 = scmp.eq.s32.totalorder %s18, 1
      %p36 = por %p34, %p35
      %p38 = scmp.ne.s32.totalorder %s23, %s37
      %p39 = scmp.eq.s32.totalorder %s18, 0
      %p40 = por %p38, %p39
      %s42 = sadd.s32 %s41, 1
      %p45 = scmp.eq.s32.totalorder %s12, 1
      %p46 = scmp.ne.s32.totalorder %s41, %s43
      %p47 = scmp.eq.s32.totalorder %s12, 0
      %p48 = por %p46, %p47
      %p49 = scmp.ne.s32.totalorder %s41, %s43
      %p50 = scmp.eq.s32.totalorder %s17, 1
      %p51 = por %p49, %p50
      %p52 = scmp.ne.s32.totalorder %s43, %s44
      %p53 = scmp.eq.s32.totalorder %s17, 0
      %p54 = por %p52, %p53
      %p55 = scmp.ne.s32.totalorder %s43, %s44
      %p56 = scmp.eq.s32.totalorder %s18, 1
      %p57 = por %p55, %p56
      %p59 = scmp.ne.s32.totalorder %s44, %s58
      %p60 = scmp.eq.s32.totalorder %s18, 0
      %p61 = por %p59, %p60
      %s62 = ssub.s32 %s12, %s19
      %p63 = scmp.eq.s32.totalorder %s62, 0
      %s65 = sadd.s32 %s64, 1
      %s66 = scalar_select %p63, %s64, %s65
      %p69 = pneg %p63
      %p70 = scmp.eq.s32.totalorder %s12, 1
      %p71 = por %p69, %p70
      %p72 = scmp.ne.s32.totalorder %s64, %s67
      %p73 = scmp.eq.s32.totalorder %s12, 0
      %p74 = por %p72, %p73
      %p75 = scmp.ne.s32.totalorder %s64, %s67
      %p76 = scmp.eq.s32.totalorder %s17, 1
      %p77 = por %p75, %p76
      %p78 = scmp.ne.s32.totalorder %s67, %s68
      %p79 = scmp.eq.s32.totalorder %s17, 0
      %p80 = por %p78, %p79
      %p81 = scmp.ne.s32.totalorder %s67, %s68
      %p82 = scmp.eq.s32.totalorder %s18, 1
      %p83 = por %p81, %p82
      %p85 = scmp.ne.s32.totalorder %s68, %s84
      %p86 = scmp.eq.s32.totalorder %s18, 0
      %p87 = por %p85, %p86
      %s88 = ssub.s32 %s12, %s19
      %p89 = scmp.eq.s32.totalorder %s88, 0
      %s91 = sadd.s32 %s90, 1
      %s92 = scalar_select %p89, %s90, %s91
      %p95 = pneg %p89
      %p96 = scmp.eq.s32.totalorder %s12, 1
      %p97 = por %p95, %p96
      %p98 = scmp.ne.s32.totalorder %s90, %s93
      %p99 = scmp.eq.s32.totalorder %s12, 0
      %p100 = por %p98, %p99
      %p101 = scmp.ne.s32.totalorder %s90, %s93
      %p102 = scmp.eq.s32.totalorder %s17, 1
      %p103 = por %p101, %p102
      %p104 = scmp.ne.s32.totalorder %s93, %s94
      %p105 = scmp.eq.s32.totalorder %s17, 0
      %p106 = por %p104, %p105
      %p107 = scmp.ne.s32.totalorder %s93, %s94
      %p108 = scmp.eq.s32.totalorder %s18, 1
      %p109 = por %p107, %p108
      %p111 = scmp.ne.s32.totalorder %s94, %s110
      %p112 = scmp.eq.s32.totalorder %s18, 0
      %p113 = por %p111, %p112
      %p114 = scmp.le.s32.totalorder 1, %s12
      %p115 = scmp.lt.s32.totalorder %s12, 3
      %p116 = pnand %p114, %p115
      %p117 = pneg %p116
      // Predicated region
      $region9: #{tpu_custom_call.1} parent=5 // pred_check
        _
      $region10: #{tpu_custom_call.1} parent=5 // pred_check_branch
        %119 = sbr.rel (%p116) target = $region12
      $region11: #{tpu_custom_call.1} parent=5 // pred_region
        %s120 = ssub.s32 %s12, 1
        // Predicated region
        $region13: #{tpu_custom_call.1} parent=11 // pred_check
          %p121 = pneg %p33
        $region14: #{tpu_custom_call.1} parent=11 // pred_check_branch
          %123 = sbr.rel (%p121) target = $region16
        $region15: #{tpu_custom_call.1} parent=11 // pred_region
          _
        $region16: #{tpu_custom_call.1} parent=11 // pred_fallthru
          _
        // Predicated region
        $region17: #{tpu_custom_call.1} parent=11 // pred_check
          %p124 = pneg %p54
        $region18: #{tpu_custom_call.1} parent=11 // pred_check_branch
          %126 = sbr.rel (%p124) target = $region20
        $region19: #{tpu_custom_call.1} parent=11 // pred_region
          _
        $region20: #{tpu_custom_call.1} parent=11 // pred_fallthru
          _
      $region12: #{tpu_custom_call.1} parent=5 // pred_fallthru
        _
      %p127 = scmp.lt.s32.totalorder %s12, 2
      // Predicated region
      $region21: #{tpu_custom_call.1} parent=5 // pred_check
        %p128 = pneg %p127
      $region22: #{tpu_custom_call.1} parent=5 // pred_check_branch
        %130 = sbr.rel (%p128) target = $region24
      $region23: #{tpu_custom_call.1} parent=5 // pred_region
        // Predicated region
        $region25: #{tpu_custom_call.1} parent=23 // pred_check
          %p131 = pneg %p74
        $region26: #{tpu_custom_call.1} parent=23 // pred_check_branch
          %133 = sbr.rel (%p131) target = $region28
        $region27: #{tpu_custom_call.1} parent=23 // pred_region
          %s134 = smul.u32 8, %s12
          %p135 = scmp.lt.s32.totalorder %s134, 15
          %s136 = scalar_select %p135, %s134, 15
          %s137 = smul.addr %s136, 4
          %s138 = scalar_lea.vmem %s2, %s137
          %s139 = smul.u32 8, %s12
        $region28: #{tpu_custom_call.1} parent=23 // pred_fallthru
          _
      $region24: #{tpu_custom_call.1} parent=5 // pred_fallthru
        _
      %p140 = scmp.le.s32.totalorder 1, %s12
      %p141 = scmp.lt.s32.totalorder %s12, 3
      %p142 = pnand %p140, %p141
      %p143 = pneg %p142
      // Predicated region
      $region29: #{tpu_custom_call.1} parent=5 // pred_check
        _
      $region30: #{tpu_custom_call.1} parent=5 // pred_check_branch
        %145 = sbr.rel (%p142) target = $region32
      $region31: #{tpu_custom_call.1} parent=5 // pred_region
        %s146 = ssub.s32 %s12, 1
        %p147 = pneg %p33
        %p148 = pneg %p30
        %p149 = pneg %p54
        %p150 = pneg %p51
        %s151 = smul.u32 8, %s17
        %p152 = scmp.lt.s32.totalorder %s151, 15
        %s153 = scalar_select %p152, %s151, 15
        %s154 = smul.addr %s153, 4
        %s155 = scalar_lea.vmem %s2, %s154
        %p156 = pneg %p80
        %p157 = pneg %p77
        %p158 = pneg %p106
        %p159 = pneg %p103
        %s160 = sand.u32 %s93, 1
        %s161 = scalar_lea.sflag [#allocation3], %s160
        %s162 = sand.u32 %s93, 1
        %s163 = smul.addr %s162, 64
        %s164 = scalar_lea.vmem [#allocation2], %s163
        %s165 = smul.u32 8, %s17
        %p166 = scmp.lt.s32.totalorder %s165, 15
        %s167 = scalar_select %p166, %s165, 15
        %s168 = smul.addr %s167, 4
        %s169 = scalar_lea.vmem %s2, %s168
        %s170 = smul.u32 8, %s17
        %s171 = smul.u32 8, %s17
        %v173 = vld [vmem:[%s0] sm:$0xf]
        %v174 = vld [vmem:[%s0 + $0x4] sm:$0xf]
        %v175 = vld [vmem:[%s0 + $0x8] sm:$0xf]
        %v176 = vld [vmem:[%s0 + $0xc] sm:$0xf]
        %v177 = vld [vmem:[%s0 + $0x10] sm:$0xf]
        %v178 = vld [vmem:[%s0 + $0x14] sm:$0xf]
        %v179 = vld [vmem:[%s0 + $0x18] sm:$0xf]
        %v180 = vld [vmem:[%s0 + $0x1c] sm:$0xf]
        %v181 = vld [vmem:[%s0 + $0x20] sm:$0xf]
        %v182 = vld [vmem:[%s0 + $0x24] sm:$0xf]
        %v183 = vld [vmem:[%s0 + $0x28] sm:$0xf]
        %v184 = vld [vmem:[%s0 + $0x2c] sm:$0xf]
        %v185 = vld [vmem:[%s0 + $0x30] sm:$0xf]
        %v186 = vld [vmem:[%s0 + $0x34] sm:$0xf]
        %v187 = vld [vmem:[%s0 + $0x38] sm:$0xf]
        %v188 = vld [vmem:[%s0 + $0x3c] sm:$0xf]
        %v189 = vld [vmem:[%s1] sm:$0xf]
        %v190 = vld [vmem:[%s1 + $0x4] sm:$0xf]
        %v207 = vunpack.c.l.b16 %v173
        %v208 = vunpack.c.l.b16 %v174
        %v209 = vunpack.c.l.b16 %v175
        %v210 = vunpack.c.l.b16 %v176
        %v211 = vunpack.c.l.b16 %v177
        %v212 = vunpack.c.l.b16 %v178
        %v213 = vunpack.c.l.b16 %v179
        %v214 = vunpack.c.l.b16 %v180
        %v215 = vunpack.c.l.b16 %v181
        %v216 = vunpack.c.l.b16 %v182
        %v217 = vunpack.c.l.b16 %v183
        %v218 = vunpack.c.l.b16 %v184
        %v219 = vunpack.c.l.b16 %v185
        %v220 = vunpack.c.l.b16 %v186
        %v221 = vunpack.c.l.b16 %v187
        %v222 = vunpack.c.l.b16 %v188
        %v223 = vpack.c.b16 %v208, %v207
        %v224 = vpack.c.b16 %v210, %v209
        %v225 = vpack.c.b16 %v212, %v211
        %v226 = vpack.c.b16 %v214, %v213
        %v227 = vpack.c.b16 %v216, %v215
        %v228 = vpack.c.b16 %v218, %v217
        %v229 = vpack.c.b16 %v220, %v219
        %v230 = vpack.c.b16 %v222, %v221
        %v233 = vunpack.c.l.b16 %v189
        %v234 = vunpack.c.l.b16 %v190
        %v235 = vpack.c.b16 %v234, %v233
        %vm237 = vcmask 130048
        %v239 = vsel %vm237, %v223, 0
        %v242 = vsel %vm237, %v224, 0
        %v245 = vsel %vm237, %v225, 0
        %v248 = vsel %vm237, %v226, 0
        %v251 = vsel %vm237, %v227, 0
        %v254 = vsel %vm237, %v228, 0
        %v257 = vsel %vm237, %v229, 0
        %v260 = vsel %vm237, %v230, 0
        %262 = vmatprep.subr.bf16.mxu0 0
        %263 = vmatpush1.bf16.msra.mxu0 %v235
        %264 = vmatprep.subr.bf16.mxu0 0
        %265 = vmatpush1.bf16.msra.mxu0 0
        %266 = vmatprep.subr.bf16.mxu0 0
        %267 = vmatpush1.bf16.msra.mxu0 0
        %268 = vmatprep.subr.bf16.mxu0 0
        %269 = vmatpush1.bf16.msra.mxu0 0
        %270 = vmatprep.subr.bf16.mxu0 0
        %271 = vmatpush1.bf16.msra.mxu0 0
        %272 = vmatprep.subr.bf16.mxu0 0
        %273 = vmatpush1.bf16.msra.mxu0 0
        %274 = vmatprep.subr.bf16.mxu0 0
        %275 = vmatpush1.bf16.msra.mxu0 0
        %276 = vmatprep.subr.bf16.mxu0 0
        %277 = vmatpush1.bf16.msra.mxu0 0
        %278 = vmatprep.subr.bf16.mxu0 0
        %279 = vmatpush1.bf16.msra.mxu0 0
        %280 = vmatprep.subr.bf16.mxu0 0
        %281 = vmatpush1.bf16.msra.mxu0 0
        %282 = vmatprep.subr.bf16.mxu0 0
        %283 = vmatpush1.bf16.msra.mxu0 0
        %284 = vmatprep.subr.bf16.mxu0 0
        %285 = vmatpush1.bf16.msra.mxu0 0
        %286 = vmatprep.subr.bf16.mxu0 0
        %287 = vmatpush1.bf16.msra.mxu0 0
        %288 = vmatprep.subr.bf16.mxu0 0
        %289 = vmatpush1.bf16.msra.mxu0 0
        %290 = vmatprep.subr.bf16.mxu0 0
        %291 = vmatpush1.bf16.msra.mxu0 0
        %292 = vmatprep.subr.bf16.mxu0 0
        %293 = vmatpush1.bf16.msra.mxu0 0
        %294 = vmatprep.mubr.bf16.mxu0 0
        %295 = vmatmul.mubr.bf16.gmra.mrb[0].mxu0 %v239
        %v296 = vpop.f32.mrb[0].mxu0
        %v297 = vadd.f32 0.0, %v296
        %v298 = vpop.f32.mrb[0].mxu0
        %v299 = vpop.f32.mrb[0].mxu0
        %v300 = vadd.f32 0.0, %v299
        %v301 = vpop.f32.mrb[0].mxu0
        %302 = vmatprep.mubr.bf16.mxu0 0
        %303 = vmatmul.mubr.bf16.gmra.mrb[0].mxu0 %v242
        %v304 = vpop.f32.mrb[0].mxu0
        %v305 = vadd.f32 0.0, %v304
        %v306 = vpop.f32.mrb[0].mxu0
        %v307 = vpop.f32.mrb[0].mxu0
        %v308 = vadd.f32 0.0, %v307
        %v309 = vpop.f32.mrb[0].mxu0
        %310 = vmatprep.mubr.bf16.mxu0 0
        %311 = vmatmul.mubr.bf16.gmra.mrb[0].mxu0 %v245
        %v312 = vpop.f32.mrb[0].mxu0
        %v313 = vadd.f32 0.0, %v312
        %v314 = vpop.f32.mrb[0].mxu0
        %v315 = vpop.f32.mrb[0].mxu0
        %v316 = vadd.f32 0.0, %v315
        %v317 = vpop.f32.mrb[0].mxu0
        %318 = vmatprep.mubr.bf16.mxu0 0
        %319 = vmatmul.mubr.bf16.gmra.mrb[0].mxu0 %v248
        %v320 = vpop.f32.mrb[0].mxu0
        %v321 = vadd.f32 0.0, %v320
        %v322 = vpop.f32.mrb[0].mxu0
        %v323 = vpop.f32.mrb[0].mxu0
        %v324 = vadd.f32 0.0, %v323
        %v325 = vpop.f32.mrb[0].mxu0
        %326 = vmatprep.mubr.bf16.mxu0 0
        %327 = vmatmul.mubr.bf16.gmra.mrb[0].mxu0 %v251
        %v328 = vpop.f32.mrb[0].mxu0
        %v329 = vadd.f32 0.0, %v328
        %v330 = vpop.f32.mrb[0].mxu0
        %v331 = vpop.f32.mrb[0].mxu0
        %v332 = vadd.f32 0.0, %v331
        %v333 = vpop.f32.mrb[0].mxu0
        %334 = vmatprep.mubr.bf16.mxu0 0
        %335 = vmatmul.mubr.bf16.gmra.mrb[0].mxu0 %v254
        %v336 = vpop.f32.mrb[0].mxu0
        %v337 = vadd.f32 0.0, %v336
        %v338 = vpop.f32.mrb[0].mxu0
        %v339 = vpop.f32.mrb[0].mxu0
        %v340 = vadd.f32 0.0, %v339
        %v341 = vpop.f32.mrb[0].mxu0
        %342 = vmatprep.mubr.bf16.mxu0 0
        %343 = vmatmul.mubr.bf16.gmra.mrb[0].mxu0 %v257
        %v344 = vpop.f32.mrb[0].mxu0
        %v345 = vadd.f32 0.0, %v344
        %v346 = vpop.f32.mrb[0].mxu0
        %v347 = vpop.f32.mrb[0].mxu0
        %v348 = vadd.f32 0.0, %v347
        %v349 = vpop.f32.mrb[0].mxu0
        %350 = vmatprep.mubr.bf16.mxu0 0
        %351 = vmatmul.mubr.bf16.gmra.mrb[0].mxu0 %v260
        %v352 = vpop.f32.mrb[0].mxu0
        %v353 = vadd.f32 0.0, %v352
        %v354 = vpop.f32.mrb[0].mxu0
        %v355 = vpop.f32.mrb[0].mxu0
        %v356 = vadd.f32 0.0, %v355
        %v357 = vpop.f32.mrb[0].mxu0
        %358 = vdwg.mxu0
        %v359 = vld [vmem:[%s169] sm:$0xf]
        %v360 = vld [vmem:[%s169 + $0x4] sm:$0xf]
        %v361 = vld [vmem:[%s169 + $0x8] sm:$0xf]
        %v362 = vld [vmem:[%s169 + $0xc] sm:$0xf]
        %v363 = vld [vmem:[%s169 + $0x10] sm:$0xf]
        %v364 = vld [vmem:[%s169 + $0x14] sm:$0xf]
        %v365 = vld [vmem:[%s169 + $0x18] sm:$0xf]
        %v366 = vld [vmem:[%s169 + $0x1c] sm:$0xf]
        %v367 = vpack.c.bf16 %v300, %v297
        %v368 = vpack.c.bf16 %v308, %v305
        %v369 = vpack.c.bf16 %v316, %v313
        %v370 = vpack.c.bf16 %v324, %v321
        %v371 = vpack.c.bf16 %v332, %v329
        %v372 = vpack.c.bf16 %v340, %v337
        %v373 = vpack.c.bf16 %v348, %v345
        %v374 = vpack.c.bf16 %v356, %v353
        %v383 = vunpack.c.l.b16 %v359
        %v384 = vunpack.c.l.b16 %v360
        %v385 = vunpack.c.l.b16 %v361
        %v386 = vunpack.c.l.b16 %v362
        %v387 = vunpack.c.l.b16 %v363
        %v388 = vunpack.c.l.b16 %v364
        %v389 = vunpack.c.l.b16 %v365
        %v390 = vunpack.c.l.b16 %v366
        %v391 = vpack.c.b16 %v384, %v383
        %v392 = vpack.c.b16 %v386, %v385
        %v393 = vpack.c.b16 %v388, %v387
        %v394 = vpack.c.b16 %v390, %v389
        %399 = vmatprep.subr.bf16.mxu0 0
        %400 = vmatpush1.bf16.msra.mxu0 %v367
        %401 = vmatprep.subr.bf16.mxu0 0
        %402 = vmatpush1.bf16.msra.mxu0 %v368
        %403 = vmatprep.subr.bf16.mxu0 0
        %404 = vmatpush1.bf16.msra.mxu0 %v369
        %405 = vmatprep.subr.bf16.mxu0 0
        %406 = vmatpush1.bf16.msra.mxu0 %v370
        %407 = vmatprep.subr.bf16.mxu0 0
        %408 = vmatpush1.bf16.msra.mxu0 %v371
        %409 = vmatprep.subr.bf16.mxu0 0
        %410 = vmatpush1.bf16.msra.mxu0 %v372
        %411 = vmatprep.subr.bf16.mxu0 0
        %412 = vmatpush1.bf16.msra.mxu0 %v373
        %413 = vmatprep.subr.bf16.mxu0 0
        %414 = vmatpush1.bf16.msra.mxu0 %v374
        %415 = vmatprep.subr.bf16.mxu0 0
        %416 = vmatpush1.bf16.msra.mxu0 0
        %417 = vmatprep.subr.bf16.mxu0 0
        %418 = vmatpush1.bf16.msra.mxu0 0
        %419 = vmatprep.subr.bf16.mxu0 0
        %420 = vmatpush1.bf16.msra.mxu0 0
        %421 = vmatprep.subr.bf16.mxu0 0
        %422 = vmatpush1.bf16.msra.mxu0 0
        %423 = vmatprep.subr.bf16.mxu0 0
        %424 = vmatpush1.bf16.msra.mxu0 0
        %425 = vmatprep.subr.bf16.mxu0 0
        %426 = vmatpush1.bf16.msra.mxu0 0
        %427 = vmatprep.subr.bf16.mxu0 0
        %428 = vmatpush1.bf16.msra.mxu0 0
        %429 = vmatprep.subr.bf16.mxu0 0
        %430 = vmatpush1.bf16.msra.mxu0 0
        %431 = vmatprep.mubr.bf16.mxu0 0
        %432 = vmatmul.mubr.bf16.gmra.mrb[0].mxu0 %v391
        %v433 = vpop.f32.mrb[0].mxu0
        %v434 = vadd.f32 0.0, %v433
        %v435 = vpop.f32.mrb[0].mxu0
        %v436 = vpop.f32.mrb[0].mxu0
        %v437 = vadd.f32 0.0, %v436
        %v438 = vpop.f32.mrb[0].mxu0
        %439 = vmatprep.mubr.bf16.mxu0 0
        %440 = vmatmul.mubr.bf16.gmra.mrb[0].mxu0 %v392
        %v441 = vpop.f32.mrb[0].mxu0
        %v442 = vadd.f32 0.0, %v441
        %v443 = vpop.f32.mrb[0].mxu0
        %v444 = vpop.f32.mrb[0].mxu0
        %v445 = vadd.f32 0.0, %v444
        %v446 = vpop.f32.mrb[0].mxu0
        %447 = vmatprep.mubr.bf16.mxu0 0
        %448 = vmatmul.mubr.bf16.gmra.mrb[0].mxu0 %v393
        %v449 = vpop.f32.mrb[0].mxu0
        %v450 = vadd.f32 0.0, %v449
        %v451 = vpop.f32.mrb[0].mxu0
        %v452 = vpop.f32.mrb[0].mxu0
        %v453 = vadd.f32 0.0, %v452
        %v454 = vpop.f32.mrb[0].mxu0
        %455 = vmatprep.mubr.bf16.mxu0 0
        %456 = vmatmul.mubr.bf16.gmra.mrb[0].mxu0 %v394
        %v457 = vpop.f32.mrb[0].mxu0
        %v458 = vadd.f32 0.0, %v457
        %v459 = vpop.f32.mrb[0].mxu0
        %v460 = vpop.f32.mrb[0].mxu0
        %v461 = vadd.f32 0.0, %v460
        %v462 = vpop.f32.mrb[0].mxu0
        %463 = vdwg.mxu0
        %v464 = vunpack.c.l.bf16 %v359
        %v465 = vunpack.c.l.bf16 %v360
        %v466 = vunpack.c.l.bf16 %v361
        %v467 = vunpack.c.l.bf16 %v362
        %v468 = vunpack.c.l.bf16 %v363
        %v469 = vunpack.c.l.bf16 %v364
        %v470 = vunpack.c.l.bf16 %v365
        %v471 = vunpack.c.l.bf16 %v366
        %472 = vadd.xlane.f32.xlu0 %v464
        %v473 = vpop.xlane.xlu0 %472
        %474 = vadd.xlane.f32.xlu0 %v465
        %v475 = vpop.xlane.xlu0 %474
        %476 = vadd.xlane.f32.xlu0 %v466
        %v477 = vpop.xlane.xlu0 %476
        %478 = vadd.xlane.f32.xlu0 %v467
        %v479 = vpop.xlane.xlu0 %478
        %480 = vadd.xlane.f32.xlu0 %v468
        %v481 = vpop.xlane.xlu0 %480
        %482 = vadd.xlane.f32.xlu0 %v469
        %v483 = vpop.xlane.xlu0 %482
        %484 = vadd.xlane.f32.xlu0 %v470
        %v485 = vpop.xlane.xlu0 %484
        %486 = vadd.xlane.f32.xlu0 %v471
        %v487 = vpop.xlane.xlu0 %486
        %v488 = vmax.f32 %v473, 1.0
        %v489 = vmax.f32 %v475, 1.0
        %v490 = vmax.f32 %v477, 1.0
        %v491 = vmax.f32 %v479, 1.0
        %v492 = vmax.f32 %v481, 1.0
        %v493 = vmax.f32 %v483, 1.0
        %v494 = vmax.f32 %v485, 1.0
        %v495 = vmax.f32 %v487, 1.0
        %v496 = vrcp.pop %v488
        %v497 = vrcp.pop %v489
        %v498 = vrcp.pop %v490
        %v499 = vrcp.pop %v491
        %v500 = vrcp.pop %v492
        %v501 = vrcp.pop %v493
        %v502 = vrcp.pop %v494
        %v503 = vrcp.pop %v495
        %v504 = vmul.f32 %v434, %v496
        %v505 = vmul.f32 %v437, %v497
        %v506 = vmul.f32 %v442, %v498
        %v507 = vmul.f32 %v445, %v499
        %v508 = vmul.f32 %v450, %v500
        %v509 = vmul.f32 %v453, %v501
        %v510 = vmul.f32 %v458, %v502
        %v511 = vmul.f32 %v461, %v503
        %512 = vst [vmem:[%s164] sm:$0xff] %v504
        %513 = vst [vmem:[%s164 + $0x8] sm:$0xff] %v505
        %514 = vst [vmem:[%s164 + $0x10] sm:$0xff] %v506
        %515 = vst [vmem:[%s164 + $0x18] sm:$0xff] %v507
        %516 = vst [vmem:[%s164 + $0x20] sm:$0xff] %v508
        %517 = vst [vmem:[%s164 + $0x28] sm:$0xff] %v509
        %518 = vst [vmem:[%s164 + $0x30] sm:$0xff] %v510
        %519 = vst [vmem:[%s164 + $0x38] sm:$0xff] %v511
        %s520 = sand.u32 %s93, 1
        %s521 = scalar_lea.sflag [#allocation3], %s520
        %s522 = sand.u32 %s93, 1
        %s523 = smul.addr %s522, 64
        %s524 = scalar_lea.vmem [#allocation2], %s523
        // Predicated region
        $region33: #{tpu_custom_call.1} parent=31 // pred_check
          %p525 = pneg %p103
        $region34: #{tpu_custom_call.1} parent=31 // pred_check_branch
          %527 = sbr.rel (%p525) target = $region36
        $region35: #{tpu_custom_call.1} parent=31 // pred_region
          %s528 = smul.u32 8, %s17
          %s530 = ssub.s32 1024, 1024
          %531 = vsyncadd %s521, %s530
          %s532 = smul.addr %s528, 128
          %s533 = scalar_lea.hbm %s3, %s532
          %s534 = sshll.u32 %s524, 4
          %s535 = int_to_ptr.vmem [resolvable:$true] %s534
          %540 = dma.vmem_to_hbm [thread:$0]  %s535, 1024, %s533, %s521, 128, 128, 8
        $region36: #{tpu_custom_call.1} parent=31 // pred_fallthru
          _
      $region32: #{tpu_custom_call.1} parent=5 // pred_fallthru
        _
      %p541 = scmp.le.s32.totalorder 2, %s12
      // Predicated region
      $region37: #{tpu_custom_call.1} parent=5 // pred_check
        %p542 = pneg %p541
      $region38: #{tpu_custom_call.1} parent=5 // pred_check_branch
        %544 = sbr.rel (%p542) target = $region40
      $region39: #{tpu_custom_call.1} parent=5 // pred_region
        %s545 = ssub.s32 %s12, 2
        // Predicated region
        $region41: #{tpu_custom_call.1} parent=39 // pred_check
          %p546 = pneg %p109
        $region42: #{tpu_custom_call.1} parent=39 // pred_check_branch
          %548 = sbr.rel (%p546) target = $region44
        $region43: #{tpu_custom_call.1} parent=39 // pred_region
          %s549 = sand.u32 %s94, 1
          %s550 = scalar_lea.sflag [#allocation3], %s549
          %s551 = sand.u32 %s94, 1
          %s552 = smul.addr %s551, 64
          %s553 = scalar_lea.vmem [#allocation2], %s552
          %554 = dma.done %s550, 1024
        $region44: #{tpu_custom_call.1} parent=39 // pred_fallthru
          _
      $region40: #{tpu_custom_call.1} parent=5 // pred_fallthru
        _
    $region6: #{tpu_custom_call.1} parent=1 // loop_footer
      %s16 = sadd.s32 1, %s12
    $region7: #{tpu_custom_call.1} parent=1 // loop_footer_branch
      %11 = sbr.rel target = $region3
    $region8: #{tpu_custom_call.1} parent=1 // loop_exit
      _
    %555 = vsyncpa [#allocation3], 1
    %s556 = scalar_lea.sflag [#allocation3], 1
    %557 = vsyncpa %s556, 1

</llo_original>
